<compile_context>
chip_gen: v5e
topology: v5e:2x2
jax: 0.10.0
libtpu: 0.0.40
codegen_flags: <defaults>
</compile_context>

<pallas_src>
import jax
import jax.numpy as jnp
from jax.experimental import pallas as pl
from jax.experimental.pallas import tpu as pltpu


LOGIT_PAD = 128          # lane-dense output width (real logits live in [:, :10])
HIDDEN = 32
IN_FEATURES = 28 * 28


def _round_up(x, m):
    return ((x + m - 1) // m) * m


def mlp_kernel(x_ref, w1_ref, b1_ref, w2_ref, b2_ref, o_ref):
    # x:  (TB, 784) f32 (cast to bf16 here)   w1: (784, 32) bf16   b1: (1, 32)  f32
    # w2: (32, 128) bf16 (cols >= 10 are zero)                     b2: (1, 128) f32
    # o:  (TB, 128) bf16
    x = x_ref[...].astype(jnp.bfloat16)                     # VPU cast, hidden under DMA
    h = jnp.dot(x, w1_ref[...], preferred_element_type=jnp.float32)
    h = jnp.maximum(h + b1_ref[...], 0.0)                   # bias + ReLU in f32
    h = h.astype(jnp.bfloat16)                              # bf16 second matmul
    out = jnp.dot(h, w2_ref[...], preferred_element_type=jnp.float32) + b2_ref[...]
    o_ref[...] = out.astype(o_ref.dtype)                    # bf16 lane-dense store


def fmnist_mlp_forward(x_nchw, w1, b1, w2, b2, *, tb=2048):
    """x_nchw: (B, 1, 28, 28) float32 -> logits (B, 10) float32."""
    B = x_nchw.shape[0]
    # Same semantics as torch's x.view(-1, 784); stream as f32, cast in-kernel.
    x2d = x_nchw.reshape(B, IN_FEATURES).astype(jnp.float32)
    w1_bf16 = w1.astype(jnp.bfloat16)
    b1_2d = b1.reshape(1, HIDDEN).astype(jnp.float32)
    # Lane-dense second layer: zero-pad the 10-wide logit dim to 128, stored bf16.
    w2_pad = (jnp.zeros((HIDDEN, LOGIT_PAD), jnp.float32)
              .at[:, :10].set(w2.astype(jnp.float32))).astype(jnp.bfloat16)
    b2_pad = jnp.zeros((1, LOGIT_PAD), jnp.float32).at[0, :10].set(b2.astype(jnp.float32))

    # Batch tile: multiple of 8 (sublane), capped at `tb`, and small enough that the
    # grid has >= 2 steps whenever the batch allows (v7x megacore sharding).
    TB = max(8, min(tb, _round_up(pl.cdiv(B, 2), 8)))
    grid = (pl.cdiv(B, TB),)     # ragged last block handled by Pallas, no jnp.pad

    cost = pl.CostEstimate(
        flops=2 * B * IN_FEATURES * HIDDEN + 2 * B * HIDDEN * LOGIT_PAD,
        transcendentals=0,
        bytes_accessed=(B * IN_FEATURES * 4            # x (f32 read)
                        + IN_FEATURES * HIDDEN * 2     # w1 (bf16)
                        + HIDDEN * LOGIT_PAD * 2       # w2 (bf16)
                        + (HIDDEN + LOGIT_PAD) * 4     # biases (f32)
                        + B * LOGIT_PAD * 2),          # out (bf16 write)
    )

    out = pl.pallas_call(
        mlp_kernel,
        out_shape=jax.ShapeDtypeStruct((grid[0] * TB, LOGIT_PAD), jnp.bfloat16),
        grid=grid,
        in_specs=[
            pl.BlockSpec((TB, IN_FEATURES), lambda i: (i, 0)),       # x: streamed per tile
            pl.BlockSpec((IN_FEATURES, HIDDEN), lambda i: (0, 0)),   # w1: VMEM-resident
            pl.BlockSpec((1, HIDDEN), lambda i: (0, 0)),             # b1: resident
            pl.BlockSpec((HIDDEN, LOGIT_PAD), lambda i: (0, 0)),     # w2 (padded): resident
            pl.BlockSpec((1, LOGIT_PAD), lambda i: (0, 0)),          # b2 (padded): resident
        ],
        out_specs=pl.BlockSpec((TB, LOGIT_PAD), lambda i: (i, 0)),
        compiler_params=pltpu.CompilerParams(
            dimension_semantics=("parallel",),
            # f32 x double-buffer at TB=2048 is ~14-15 MiB; raise above v5e's
            # 16 MiB default scoped limit. Well inside physical VMEM on all gens.
            vmem_limit_bytes=32 << 20,
        ),
        cost_estimate=cost,
    )(x2d, w1_bf16, b1_2d, w2_pad, b2_pad)

    return out[:B, :10].astype(jnp.float32)


def init_params(key):
    """Deterministic init matching nn.Linear's default U(-1/sqrt(fan_in), 1/sqrt(fan_in))."""
    k1, k2, k3, k4 = jax.random.split(key, 4)
    fan1 = IN_FEATURES
    fan2 = HIDDEN
    bound1 = 1.0 / jnp.sqrt(fan1)
    bound2 = 1.0 / jnp.sqrt(fan2)
    # Stored transposed relative to torch's (out, in): here (in, out) for x @ W.
    w1 = jax.random.uniform(k1, (fan1, HIDDEN), jnp.float32, -bound1, bound1)
    b1 = jax.random.uniform(k2, (HIDDEN,), jnp.float32, -bound1, bound1)
    w2 = jax.random.uniform(k3, (fan2, 10), jnp.float32, -bound2, bound2)
    b2 = jax.random.uniform(k4, (10,), jnp.float32, -bound2, bound2)
    return w1, b1, w2, b2


if __name__ == "__main__":
    key = jax.random.PRNGKey(0)
    kx, kp = jax.random.split(key)

    B = 8
    x = jax.random.normal(kx, (B, 1, 28, 28), dtype=jnp.float32)   # NCHW like PyTorch
    w1, b1, w2, b2 = init_params(kp)

    out = fmnist_mlp_forward(x, w1, b1, w2, b2)
    out = jax.block_until_ready(out)
    assert out.shape == (B, 10)
    assert jnp.all(jnp.isfinite(out))

    # Reference with matching bf16 casts (x, w1, h, w2) and f32 accumulation.
    xb = x.reshape(B, -1).astype(jnp.bfloat16).astype(jnp.float32)
    w1b = w1.astype(jnp.bfloat16).astype(jnp.float32)
    w2b = w2.astype(jnp.bfloat16).astype(jnp.float32)
    h_ref = jnp.maximum(
        jnp.dot(xb, w1b, precision=jax.lax.Precision.HIGHEST) + b1, 0.0)
    h_ref = h_ref.astype(jnp.bfloat16).astype(jnp.float32)
    ref = jnp.dot(h_ref, w2b, precision=jax.lax.Precision.HIGHEST) + b2
    assert jnp.allclose(out, ref, atol=2e-2, rtol=2e-2)

    # Looser check against the pure-f32 PyTorch-equivalent forward.
    ref_f32 = jnp.maximum(x.reshape(B, -1) @ w1 + b1, 0.0) @ w2 + b2
    assert jnp.allclose(out, ref_f32, atol=1e-1, rtol=1e-1)

    print("KERNEL_OK")
</pallas_src>

<mosaic_0001>
module attributes {stable_mosaic.version = 11 : i64} {
  func.func @mlp_kernel(%arg0: i32, %arg1: memref<8x784xf32, #tpu.memory_space<vmem>>, %arg2: memref<784x32xbf16, #tpu.memory_space<vmem>>, %arg3: memref<1x32xf32, #tpu.memory_space<vmem>>, %arg4: memref<32x128xbf16, #tpu.memory_space<vmem>>, %arg5: memref<1x128xf32, #tpu.memory_space<vmem>>, %arg6: memref<8x128xbf16, #tpu.memory_space<vmem>>) attributes {dimension_semantics = [#tpu.dimension_semantics<parallel>], iteration_bounds = array<i64: 1>, scalar_prefetch = 0 : i64, scratch_operands = 0 : i64, tpu.core_type = #tpu.core_type<tc>, window_params = [{transform_indices = @transform_0, window_bounds = array<i64: 8, 784>}, {pipeline_mode = #tpu.pipeline_mode<synchronous>, transform_indices = @transform_1, window_bounds = array<i64: 784, 32>}, {pipeline_mode = #tpu.pipeline_mode<synchronous>, transform_indices = @transform_2, window_bounds = array<i64: 1, 32>}, {pipeline_mode = #tpu.pipeline_mode<synchronous>, transform_indices = @transform_3, window_bounds = array<i64: 32, 128>}, {pipeline_mode = #tpu.pipeline_mode<synchronous>, transform_indices = @transform_4, window_bounds = array<i64: 1, 128>}, {transform_indices = @transform_5, window_bounds = array<i64: 8, 128>}]} {
    %c0 = arith.constant 0 : index
    %c0_0 = arith.constant 0 : index
    %0 = vector.load %arg1[%c0, %c0_0] : memref<8x784xf32, #tpu.memory_space<vmem>>, vector<8x784xf32>
    %1 = arith.truncf %0 : vector<8x784xf32> to vector<8x784xbf16>
    %c0_1 = arith.constant 0 : index
    %c0_2 = arith.constant 0 : index
    %2 = vector.load %arg2[%c0_1, %c0_2] : memref<784x32xbf16, #tpu.memory_space<vmem>>, vector<784x32xbf16>
    %cst = arith.constant dense<0.000000e+00> : vector<8x32xf32>
    %3 = tpu.matmul %1, %2, %cst {dimension_numbers = #tpu.dot_dimension_numbers<[1], [0], [0], [1], [0, 0, 1, 1], [], []>} : vector<8x784xbf16>, vector<784x32xbf16>, vector<8x32xf32> -> vector<8x32xf32>
    %c0_3 = arith.constant 0 : index
    %c0_4 = arith.constant 0 : index
    %4 = vector.load %arg3[%c0_3, %c0_4] : memref<1x32xf32, #tpu.memory_space<vmem>>, vector<1x32xf32>
    %5 = vector.broadcast %4 : vector<1x32xf32> to vector<8x32xf32>
    %6 = arith.addf %3, %5 : vector<8x32xf32>
    %cst_5 = arith.constant 0.000000e+00 : f32
    %7 = vector.broadcast %cst_5 : f32 to vector<8x32xf32>
    %8 = arith.maximumf %6, %7 : vector<8x32xf32>
    %9 = arith.truncf %8 : vector<8x32xf32> to vector<8x32xbf16>
    %c0_6 = arith.constant 0 : index
    %c0_7 = arith.constant 0 : index
    %10 = vector.load %arg4[%c0_6, %c0_7] : memref<32x128xbf16, #tpu.memory_space<vmem>>, vector<32x128xbf16>
    %cst_8 = arith.constant dense<0.000000e+00> : vector<8x128xf32>
    %11 = tpu.matmul %9, %10, %cst_8 {dimension_numbers = #tpu.dot_dimension_numbers<[1], [0], [0], [1], [0, 0, 1, 1], [], []>} : vector<8x32xbf16>, vector<32x128xbf16>, vector<8x128xf32> -> vector<8x128xf32>
    %c0_9 = arith.constant 0 : index
    %c0_10 = arith.constant 0 : index
    %12 = vector.load %arg5[%c0_9, %c0_10] : memref<1x128xf32, #tpu.memory_space<vmem>>, vector<1x128xf32>
    %13 = vector.broadcast %12 : vector<1x128xf32> to vector<8x128xf32>
    %14 = arith.addf %11, %13 : vector<8x128xf32>
    %15 = arith.truncf %14 : vector<8x128xf32> to vector<8x128xbf16>
    %c0_11 = arith.constant 0 : index
    %c0_12 = arith.constant 0 : index
    %16 = vector.load %arg6[%c0_11, %c0_12] : memref<8x128xbf16, #tpu.memory_space<vmem>>, vector<8x128xbf16>
    tpu.vector_store %arg6[%c0_11, %c0_12], %15 {strides = array<i32>} : memref<8x128xbf16, #tpu.memory_space<vmem>>, vector<8x128xbf16>,
    return
  }
  func.func @transform_0(%arg0: i32) -> (i32, i32) {
    %c0_i32 = arith.constant 0 : i32
    %c0_i32_0 = arith.constant 0 : i32
    return %arg0, %c0_i32 : i32, i32
  }
  func.func @transform_1(%arg0: i32) -> (i32, i32) {
    %c0_i32 = arith.constant 0 : i32
    %c0_i32_0 = arith.constant 0 : i32
    %c0_i32_1 = arith.constant 0 : i32
    return %c0_i32, %c0_i32_0 : i32, i32
  }
  func.func @transform_2(%arg0: i32) -> (i32, i32) {
    %c0_i32 = arith.constant 0 : i32
    %c0_i32_0 = arith.constant 0 : i32
    %c0_i32_1 = arith.constant 0 : i32
    return %c0_i32, %c0_i32_0 : i32, i32
  }
  func.func @transform_3(%arg0: i32) -> (i32, i32) {
    %c0_i32 = arith.constant 0 : i32
    %c0_i32_0 = arith.constant 0 : i32
    %c0_i32_1 = arith.constant 0 : i32
    return %c0_i32, %c0_i32_0 : i32, i32
  }
  func.func @transform_4(%arg0: i32) -> (i32, i32) {
    %c0_i32 = arith.constant 0 : i32
    %c0_i32_0 = arith.constant 0 : i32
    %c0_i32_1 = arith.constant 0 : i32
    return %c0_i32, %c0_i32_0 : i32, i32
  }
  func.func @transform_5(%arg0: i32) -> (i32, i32) {
    %c0_i32 = arith.constant 0 : i32
    %c0_i32_0 = arith.constant 0 : i32
    return %arg0, %c0_i32 : i32, i32
  }
}

</mosaic_0001>

<llo_original>
// kernel: tpu_custom_call.1
$region0: #{tpu_custom_call.1}
  #allocation0 [shape = 'u32[]', space=smem, size = 0x4, offset = 0x4, fixed_abs, tag = 'smem constant byte address 0x4 - core index']
  #allocation1 [shape = 'u32[72,128]{1,0:T(1,128)}', space=vmem, size = 0x9000, scoped, tag = 'internal scratch']
  %s0 = inlined_call_operand.vmem [shape: f32[8,784], index: 0, kind: input, shape index: {}]
  %s1 = inlined_call_operand.vmem [shape: bf16[784,32], index: 1, kind: input, shape index: {}]
  %s2 = inlined_call_operand.vmem [shape: f32[1,32], index: 2, kind: input, shape index: {}]
  %s3 = inlined_call_operand.vmem [shape: bf16[32,128], index: 3, kind: input, shape index: {}]
  %s4 = inlined_call_operand.vmem [shape: f32[1,128], index: 4, kind: input, shape index: {}]
  %s5 = inlined_call_operand.hbm [shape: bf16[8,128], index: 5, kind: output, shape index: {}]
  %s6 = sld [smem:[#allocation0]]
  $region30: #{tpu_custom_call.1} parent=0
    _
  %s8 = ssub.s32 1, %s6
  %s9 = scalar_select 0, %s8, %s6
  $region1: #{tpu_custom_call.1} parent=0
    #allocation2 [shape = 'u8[2048]{0}', space=vmem, size = 0x800, scoped, tag = 'output window, operand 0, single buffered']
    #allocation3 [shape = 's32[1]{0}', space=sflag, size = 0x4, scoped, tag = 'scoped memory for tpu_custom_call.1']
    %10 = vsyncpa [#allocation3], 0
    // Predicated region
    $region2: #{tpu_custom_call.1} parent=1 // pred_check
      _
    $region3: #{tpu_custom_call.1} parent=1 // pred_check_branch
      %12 = sbr.rel (0) target = $region5
    $region4: #{tpu_custom_call.1} parent=1 // pred_region
      _
    $region5: #{tpu_custom_call.1} parent=1 // pred_fallthru
      _
    // Predicated region
    $region6: #{tpu_custom_call.1} parent=1 // pred_check
      _
    $region7: #{tpu_custom_call.1} parent=1 // pred_check_branch
      %14 = sbr.rel (0) target = $region9
    $region8: #{tpu_custom_call.1} parent=1 // pred_region
      _
    $region9: #{tpu_custom_call.1} parent=1 // pred_fallthru
      _
    // Predicated region
    $region10: #{tpu_custom_call.1} parent=1 // pred_check
      _
    $region11: #{tpu_custom_call.1} parent=1 // pred_check_branch
      %16 = sbr.rel (0) target = $region13
    $region12: #{tpu_custom_call.1} parent=1 // pred_region
      _
    $region13: #{tpu_custom_call.1} parent=1 // pred_fallthru
      _
    // Predicated region
    $region14: #{tpu_custom_call.1} parent=1 // pred_check
      _
    $region15: #{tpu_custom_call.1} parent=1 // pred_check_branch
      %18 = sbr.rel (0) target = $region17
    $region16: #{tpu_custom_call.1} parent=1 // pred_region
      _
    $region17: #{tpu_custom_call.1} parent=1 // pred_fallthru
      _
    // Predicated region
    $region18: #{tpu_custom_call.1} parent=1 // pred_check
      _
    $region19: #{tpu_custom_call.1} parent=1 // pred_check_branch
      %20 = sbr.rel (0) target = $region21
    $region20: #{tpu_custom_call.1} parent=1 // pred_region
      _
    $region21: #{tpu_custom_call.1} parent=1 // pred_fallthru
      _
    %v22 = vld [vmem:[%s0] sm:$0xff]
    %v23 = vld [vmem:[%s0 + $0x8] sm:$0xff]
    %v24 = vld [vmem:[%s0 + $0x10] sm:$0xff]
    %v25 = vld [vmem:[%s0 + $0x18] sm:$0xff]
    %v26 = vld [vmem:[%s0 + $0x20] sm:$0xff]
    %v27 = vld [vmem:[%s0 + $0x28] sm:$0xff]
    %v28 = vld [vmem:[%s0 + $0x30] sm:$0xff]
    %v29 = vpack.c.bf16 %v22, %v22
    %v30 = vpack.c.bf16 %v23, %v23
    %v31 = vpack.c.bf16 %v24, %v24
    %v32 = vpack.c.bf16 %v25, %v25
    %v33 = vpack.c.bf16 %v26, %v26
    %v34 = vpack.c.bf16 %v27, %v27
    %v35 = vpack.c.bf16 %v28, %v28
    %v36 = vld [vmem:[%s1] sm:$0xf]
    %v37 = vld [vmem:[%s1 + $0x4] sm:$0xf]
    %v38 = vld [vmem:[%s1 + $0x8] sm:$0xf]
    %v39 = vld [vmem:[%s1 + $0xc] sm:$0xf]
    %v40 = vld [vmem:[%s1 + $0x10] sm:$0xf]
    %v41 = vld [vmem:[%s1 + $0x14] sm:$0xf]
    %v42 = vld [vmem:[%s1 + $0x18] sm:$0xf]
    %v43 = vld [vmem:[%s1 + $0x1c] sm:$0xf]
    %v44 = vld [vmem:[%s1 + $0x20] sm:$0xf]
    %v45 = vld [vmem:[%s1 + $0x24] sm:$0xf]
    %v46 = vld [vmem:[%s1 + $0x28] sm:$0xf]
    %v47 = vld [vmem:[%s1 + $0x2c] sm:$0xf]
    %v48 = vld [vmem:[%s1 + $0x30] sm:$0xf]
    %v49 = vld [vmem:[%s1 + $0x34] sm:$0xf]
    %v50 = vld [vmem:[%s1 + $0x38] sm:$0xf]
    %v51 = vld [vmem:[%s1 + $0x3c] sm:$0xf]
    %v52 = vld [vmem:[%s1 + $0x40] sm:$0xf]
    %v53 = vld [vmem:[%s1 + $0x44] sm:$0xf]
    %v54 = vld [vmem:[%s1 + $0x48] sm:$0xf]
    %v55 = vld [vmem:[%s1 + $0x4c] sm:$0xf]
    %v56 = vld [vmem:[%s1 + $0x50] sm:$0xf]
    %v57 = vld [vmem:[%s1 + $0x54] sm:$0xf]
    %v58 = vld [vmem:[%s1 + $0x58] sm:$0xf]
    %v59 = vld [vmem:[%s1 + $0x5c] sm:$0xf]
    %v60 = vld [vmem:[%s1 + $0x60] sm:$0xf]
    %v61 = vld [vmem:[%s1 + $0x64] sm:$0xf]
    %v62 = vld [vmem:[%s1 + $0x68] sm:$0xf]
    %v63 = vld [vmem:[%s1 + $0x6c] sm:$0xf]
    %v64 = vld [vmem:[%s1 + $0x70] sm:$0xf]
    %v65 = vld [vmem:[%s1 + $0x74] sm:$0xf]
    %v66 = vld [vmem:[%s1 + $0x78] sm:$0xf]
    %v67 = vld [vmem:[%s1 + $0x7c] sm:$0xf]
    %v68 = vld [vmem:[%s1 + $0x80] sm:$0xf]
    %v69 = vld [vmem:[%s1 + $0x84] sm:$0xf]
    %v70 = vld [vmem:[%s1 + $0x88] sm:$0xf]
    %v71 = vld [vmem:[%s1 + $0x8c] sm:$0xf]
    %v72 = vld [vmem:[%s1 + $0x90] sm:$0xf]
    %v73 = vld [vmem:[%s1 + $0x94] sm:$0xf]
    %v74 = vld [vmem:[%s1 + $0x98] sm:$0xf]
    %v75 = vld [vmem:[%s1 + $0x9c] sm:$0xf]
    %v76 = vld [vmem:[%s1 + $0xa0] sm:$0xf]
    %v77 = vld [vmem:[%s1 + $0xa4] sm:$0xf]
    %v78 = vld [vmem:[%s1 + $0xa8] sm:$0xf]
    %v79 = vld [vmem:[%s1 + $0xac] sm:$0xf]
    %v80 = vld [vmem:[%s1 + $0xb0] sm:$0xf]
    %v81 = vld [vmem:[%s1 + $0xb4] sm:$0xf]
    %v82 = vld [vmem:[%s1 + $0xb8] sm:$0xf]
    %v83 = vld [vmem:[%s1 + $0xbc] sm:$0xf]
    %v84 = vld [vmem:[%s1 + $0xc0] sm:$0xf]
    %v85 = vld [vmem:[%s1 + $0xc4] sm:$0xf]
    %v86 = vld [vmem:[%s1 + $0xc8] sm:$0xf]
    %v87 = vld [vmem:[%s1 + $0xcc] sm:$0xf]
    %v88 = vld [vmem:[%s1 + $0xd0] sm:$0xf]
    %v89 = vld [vmem:[%s1 + $0xd4] sm:$0xf]
    %v90 = vld [vmem:[%s1 + $0xd8] sm:$0xf]
    %v91 = vld [vmem:[%s1 + $0xdc] sm:$0xf]
    %v92 = vld [vmem:[%s1 + $0xe0] sm:$0xf]
    %v93 = vld [vmem:[%s1 + $0xe4] sm:$0xf]
    %v94 = vld [vmem:[%s1 + $0xe8] sm:$0xf]
    %v95 = vld [vmem:[%s1 + $0xec] sm:$0xf]
    %v96 = vld [vmem:[%s1 + $0xf0] sm:$0xf]
    %v97 = vld [vmem:[%s1 + $0xf4] sm:$0xf]
    %v98 = vld [vmem:[%s1 + $0xf8] sm:$0xf]
    %v99 = vld [vmem:[%s1 + $0xfc] sm:$0xf]
    %v100 = vld [vmem:[%s1 + $0x100] sm:$0xf]
    %v101 = vld [vmem:[%s1 + $0x104] sm:$0xf]
    %v102 = vld [vmem:[%s1 + $0x108] sm:$0xf]
    %v103 = vld [vmem:[%s1 + $0x10c] sm:$0xf]
    %v104 = vld [vmem:[%s1 + $0x110] sm:$0xf]
    %v105 = vld [vmem:[%s1 + $0x114] sm:$0xf]
    %v106 = vld [vmem:[%s1 + $0x118] sm:$0xf]
    %v107 = vld [vmem:[%s1 + $0x11c] sm:$0xf]
    %v108 = vld [vmem:[%s1 + $0x120] sm:$0xf]
    %v109 = vld [vmem:[%s1 + $0x124] sm:$0xf]
    %v110 = vld [vmem:[%s1 + $0x128] sm:$0xf]
    %v111 = vld [vmem:[%s1 + $0x12c] sm:$0xf]
    %v112 = vld [vmem:[%s1 + $0x130] sm:$0xf]
    %v113 = vld [vmem:[%s1 + $0x134] sm:$0xf]
    %v114 = vld [vmem:[%s1 + $0x138] sm:$0xf]
    %v115 = vld [vmem:[%s1 + $0x13c] sm:$0xf]
    %v116 = vld [vmem:[%s1 + $0x140] sm:$0xf]
    %v117 = vld [vmem:[%s1 + $0x144] sm:$0xf]
    %v118 = vld [vmem:[%s1 + $0x148] sm:$0xf]
    %v119 = vld [vmem:[%s1 + $0x14c] sm:$0xf]
    %v120 = vld [vmem:[%s1 + $0x150] sm:$0xf]
    %v121 = vld [vmem:[%s1 + $0x154] sm:$0xf]
    %v122 = vld [vmem:[%s1 + $0x158] sm:$0xf]
    %v123 = vld [vmem:[%s1 + $0x15c] sm:$0xf]
    %v124 = vld [vmem:[%s1 + $0x160] sm:$0xf]
    %v125 = vld [vmem:[%s1 + $0x164] sm:$0xf]
    %v126 = vld [vmem:[%s1 + $0x168] sm:$0xf]
    %v127 = vld [vmem:[%s1 + $0x16c] sm:$0xf]
    %v128 = vld [vmem:[%s1 + $0x170] sm:$0xf]
    %v129 = vld [vmem:[%s1 + $0x174] sm:$0xf]
    %v130 = vld [vmem:[%s1 + $0x178] sm:$0xf]
    %v131 = vld [vmem:[%s1 + $0x17c] sm:$0xf]
    %v132 = vld [vmem:[%s1 + $0x180] sm:$0xf]
    %v133 = vld [vmem:[%s1 + $0x184] sm:$0xf]
    %v134 = vld [vmem:[%s2] sm:$0x1]
    %v136 = vperm.slane %v134, 0
    %v236 = vunpack.c.l.b16 %v36
    %v237 = vunpack.c.l.b16 %v37
    %v238 = vunpack.c.l.b16 %v38
    %v239 = vunpack.c.l.b16 %v39
    %v240 = vunpack.c.l.b16 %v40
    %v241 = vunpack.c.l.b16 %v41
    %v242 = vunpack.c.l.b16 %v42
    %v243 = vunpack.c.l.b16 %v43
    %v244 = vunpack.c.l.b16 %v44
    %v245 = vunpack.c.l.b16 %v45
    %v246 = vunpack.c.l.b16 %v46
    %v247 = vunpack.c.l.b16 %v47
    %v248 = vunpack.c.l.b16 %v48
    %v249 = vunpack.c.l.b16 %v49
    %v250 = vunpack.c.l.b16 %v50
    %v251 = vunpack.c.l.b16 %v51
    %v252 = vunpack.c.l.b16 %v52
    %v253 = vunpack.c.l.b16 %v53
    %v254 = vunpack.c.l.b16 %v54
    %v255 = vunpack.c.l.b16 %v55
    %v256 = vunpack.c.l.b16 %v56
    %v257 = vunpack.c.l.b16 %v57
    %v258 = vunpack.c.l.b16 %v58
    %v259 = vunpack.c.l.b16 %v59
    %v260 = vunpack.c.l.b16 %v60
    %v261 = vunpack.c.l.b16 %v61
    %v262 = vunpack.c.l.b16 %v62
    %v263 = vunpack.c.l.b16 %v63
    %v264 = vunpack.c.l.b16 %v64
    %v265 = vunpack.c.l.b16 %v65
    %v266 = vunpack.c.l.b16 %v66
    %v267 = vunpack.c.l.b16 %v67
    %v268 = vunpack.c.l.b16 %v68
    %v269 = vunpack.c.l.b16 %v69
    %v270 = vunpack.c.l.b16 %v70
    %v271 = vunpack.c.l.b16 %v71
    %v272 = vunpack.c.l.b16 %v72
    %v273 = vunpack.c.l.b16 %v73
    %v274 = vunpack.c.l.b16 %v74
    %v275 = vunpack.c.l.b16 %v75
    %v276 = vunpack.c.l.b16 %v76
    %v277 = vunpack.c.l.b16 %v77
    %v278 = vunpack.c.l.b16 %v78
    %v279 = vunpack.c.l.b16 %v79
    %v280 = vunpack.c.l.b16 %v80
    %v281 = vunpack.c.l.b16 %v81
    %v282 = vunpack.c.l.b16 %v82
    %v283 = vunpack.c.l.b16 %v83
    %v284 = vunpack.c.l.b16 %v84
    %v285 = vunpack.c.l.b16 %v85
    %v286 = vunpack.c.l.b16 %v86
    %v287 = vunpack.c.l.b16 %v87
    %v288 = vunpack.c.l.b16 %v88
    %v289 = vunpack.c.l.b16 %v89
    %v290 = vunpack.c.l.b16 %v90
    %v291 = vunpack.c.l.b16 %v91
    %v292 = vunpack.c.l.b16 %v92
    %v293 = vunpack.c.l.b16 %v93
    %v294 = vunpack.c.l.b16 %v94
    %v295 = vunpack.c.l.b16 %v95
    %v296 = vunpack.c.l.b16 %v96
    %v297 = vunpack.c.l.b16 %v97
    %v298 = vunpack.c.l.b16 %v98
    %v299 = vunpack.c.l.b16 %v99
    %v300 = vunpack.c.l.b16 %v100
    %v301 = vunpack.c.l.b16 %v101
    %v302 = vunpack.c.l.b16 %v102
    %v303 = vunpack.c.l.b16 %v103
    %v304 = vunpack.c.l.b16 %v104
    %v305 = vunpack.c.l.b16 %v105
    %v306 = vunpack.c.l.b16 %v106
    %v307 = vunpack.c.l.b16 %v107
    %v308 = vunpack.c.l.b16 %v108
    %v309 = vunpack.c.l.b16 %v109
    %v310 = vunpack.c.l.b16 %v110
    %v311 = vunpack.c.l.b16 %v111
    %v312 = vunpack.c.l.b16 %v112
    %v313 = vunpack.c.l.b16 %v113
    %v314 = vunpack.c.l.b16 %v114
    %v315 = vunpack.c.l.b16 %v115
    %v316 = vunpack.c.l.b16 %v116
    %v317 = vunpack.c.l.b16 %v117
    %v318 = vunpack.c.l.b16 %v118
    %v319 = vunpack.c.l.b16 %v119
    %v320 = vunpack.c.l.b16 %v120
    %v321 = vunpack.c.l.b16 %v121
    %v322 = vunpack.c.l.b16 %v122
    %v323 = vunpack.c.l.b16 %v123
    %v324 = vunpack.c.l.b16 %v124
    %v325 = vunpack.c.l.b16 %v125
    %v326 = vunpack.c.l.b16 %v126
    %v327 = vunpack.c.l.b16 %v127
    %v328 = vunpack.c.l.b16 %v128
    %v329 = vunpack.c.l.b16 %v129
    %v330 = vunpack.c.l.b16 %v130
    %v331 = vunpack.c.l.b16 %v131
    %v332 = vunpack.c.l.b16 %v132
    %v333 = vunpack.c.l.b16 %v133
    %v334 = vpack.c.b16 %v237, %v236
    %v335 = vpack.c.b16 %v239, %v238
    %v336 = vpack.c.b16 %v241, %v240
    %v337 = vpack.c.b16 %v243, %v242
    %v338 = vpack.c.b16 %v245, %v244
    %v339 = vpack.c.b16 %v247, %v246
    %v340 = vpack.c.b16 %v249, %v248
    %v341 = vpack.c.b16 %v251, %v250
    %v342 = vpack.c.b16 %v253, %v252
    %v343 = vpack.c.b16 %v255, %v254
    %v344 = vpack.c.b16 %v257, %v256
    %v345 = vpack.c.b16 %v259, %v258
    %v346 = vpack.c.b16 %v261, %v260
    %v347 = vpack.c.b16 %v263, %v262
    %v348 = vpack.c.b16 %v265, %v264
    %v349 = vpack.c.b16 %v267, %v266
    %v350 = vpack.c.b16 %v269, %v268
    %v351 = vpack.c.b16 %v271, %v270
    %v352 = vpack.c.b16 %v273, %v272
    %v353 = vpack.c.b16 %v275, %v274
    %v354 = vpack.c.b16 %v277, %v276
    %v355 = vpack.c.b16 %v279, %v278
    %v356 = vpack.c.b16 %v281, %v280
    %v357 = vpack.c.b16 %v283, %v282
    %v358 = vpack.c.b16 %v285, %v284
    %v359 = vpack.c.b16 %v287, %v286
    %v360 = vpack.c.b16 %v289, %v288
    %v361 = vpack.c.b16 %v291, %v290
    %v362 = vpack.c.b16 %v293, %v292
    %v363 = vpack.c.b16 %v295, %v294
    %v364 = vpack.c.b16 %v297, %v296
    %v365 = vpack.c.b16 %v299, %v298
    %v366 = vpack.c.b16 %v301, %v300
    %v367 = vpack.c.b16 %v303, %v302
    %v368 = vpack.c.b16 %v305, %v304
    %v369 = vpack.c.b16 %v307, %v306
    %v370 = vpack.c.b16 %v309, %v308
    %v371 = vpack.c.b16 %v311, %v310
    %v372 = vpack.c.b16 %v313, %v312
    %v373 = vpack.c.b16 %v315, %v314
    %v374 = vpack.c.b16 %v317, %v316
    %v375 = vpack.c.b16 %v319, %v318
    %v376 = vpack.c.b16 %v321, %v320
    %v377 = vpack.c.b16 %v323, %v322
    %v378 = vpack.c.b16 %v325, %v324
    %v379 = vpack.c.b16 %v327, %v326
    %v380 = vpack.c.b16 %v329, %v328
    %v381 = vpack.c.b16 %v331, %v330
    %v382 = vpack.c.b16 %v333, %v332
    %vm432 = vcmask 130048
    %v434 = vsel %vm432, %v35, 0
    %436 = vmatpush.bf16.msra.mxu0 %v341
    %437 = vmatpush.bf16.msra.mxu0 %v340
    %438 = vmatpush.bf16.msra.mxu0 %v339
    %439 = vmatpush.bf16.msra.mxu0 %v338
    %440 = vmatpush.bf16.msra.mxu0 %v337
    %441 = vmatpush.bf16.msra.mxu0 %v336
    %442 = vmatpush.bf16.msra.mxu0 %v335
    %443 = vmatpush.bf16.msra.mxu0 %v334
    %444 = vmatmul.bf16.gmra.mxu0 %v29
    %v445 = vpop.f32.mrf.mxu0
    %v446 = vadd.f32 %v136, %v445
    %v447 = vpop.f32.mrf.mxu0
    %448 = vdwg.mxu0
    %449 = vmatpush.bf16.msra.mxu0 %v349
    %450 = vmatpush.bf16.msra.mxu0 %v348
    %451 = vmatpush.bf16.msra.mxu0 %v347
    %452 = vmatpush.bf16.msra.mxu0 %v346
    %453 = vmatpush.bf16.msra.mxu0 %v345
    %454 = vmatpush.bf16.msra.mxu0 %v344
    %455 = vmatpush.bf16.msra.mxu0 %v343
    %456 = vmatpush.bf16.msra.mxu0 %v342
    %457 = vmatmul.bf16.gmra.mxu0 %v30
    %v458 = vpop.f32.mrf.mxu0
    %v459 = vadd.f32 %v446, %v458
    %v460 = vpop.f32.mrf.mxu0
    %461 = vdwg.mxu0
    %462 = vmatpush.bf16.msra.mxu0 %v357
    %463 = vmatpush.bf16.msra.mxu0 %v356
    %464 = vmatpush.bf16.msra.mxu0 %v355
    %465 = vmatpush.bf16.msra.mxu0 %v354
    %466 = vmatpush.bf16.msra.mxu0 %v353
    %467 = vmatpush.bf16.msra.mxu0 %v352
    %468 = vmatpush.bf16.msra.mxu0 %v351
    %469 = vmatpush.bf16.msra.mxu0 %v350
    %470 = vmatmul.bf16.gmra.mxu0 %v31
    %v471 = vpop.f32.mrf.mxu0
    %v472 = vadd.f32 %v459, %v471
    %v473 = vpop.f32.mrf.mxu0
    %474 = vdwg.mxu0
    %475 = vmatpush.bf16.msra.mxu0 %v365
    %476 = vmatpush.bf16.msra.mxu0 %v364
    %477 = vmatpush.bf16.msra.mxu0 %v363
    %478 = vmatpush.bf16.msra.mxu0 %v362
    %479 = vmatpush.bf16.msra.mxu0 %v361
    %480 = vmatpush.bf16.msra.mxu0 %v360
    %481 = vmatpush.bf16.msra.mxu0 %v359
    %482 = vmatpush.bf16.msra.mxu0 %v358
    %483 = vmatmul.bf16.gmra.mxu0 %v32
    %v484 = vpop.f32.mrf.mxu0
    %v485 = vadd.f32 %v472, %v484
    %v486 = vpop.f32.mrf.mxu0
    %487 = vdwg.mxu0
    %488 = vmatpush.bf16.msra.mxu0 %v373
    %489 = vmatpush.bf16.msra.mxu0 %v372
    %490 = vmatpush.bf16.msra.mxu0 %v371
    %491 = vmatpush.bf16.msra.mxu0 %v370
    %492 = vmatpush.bf16.msra.mxu0 %v369
    %493 = vmatpush.bf16.msra.mxu0 %v368
    %494 = vmatpush.bf16.msra.mxu0 %v367
    %495 = vmatpush.bf16.msra.mxu0 %v366
    %496 = vmatmul.bf16.gmra.mxu0 %v33
    %v497 = vpop.f32.mrf.mxu0
    %v498 = vadd.f32 %v485, %v497
    %v499 = vpop.f32.mrf.mxu0
    %500 = vdwg.mxu0
    %501 = vmatpush.bf16.msra.mxu0 %v381
    %502 = vmatpush.bf16.msra.mxu0 %v380
    %503 = vmatpush.bf16.msra.mxu0 %v379
    %504 = vmatpush.bf16.msra.mxu0 %v378
    %505 = vmatpush.bf16.msra.mxu0 %v377
    %506 = vmatpush.bf16.msra.mxu0 %v376
    %507 = vmatpush.bf16.msra.mxu0 %v375
    %508 = vmatpush.bf16.msra.mxu0 %v374
    %509 = vmatmul.bf16.gmra.mxu0 %v34
    %v510 = vpop.f32.mrf.mxu0
    %v511 = vadd.f32 %v498, %v510
    %v512 = vpop.f32.mrf.mxu0
    %513 = vdwg.mxu0
    %514 = vmatpush.bf16.msra.mxu0 0
    %515 = vmatpush.bf16.msra.mxu0 0
    %516 = vmatpush.bf16.msra.mxu0 0
    %517 = vmatpush.bf16.msra.mxu0 0
    %518 = vmatpush.bf16.msra.mxu0 0
    %519 = vmatpush.bf16.msra.mxu0 0
    %520 = vmatpush.bf16.msra.mxu0 0
    %521 = vmatpush.bf16.msra.mxu0 %v382
    %522 = vmatmul.bf16.gmra.mxu0 %v434
    %v523 = vpop.f32.mrf.mxu0
    %v524 = vadd.f32 %v511, %v523
    %v525 = vpop.f32.mrf.mxu0
    %526 = vdwg.mxu0
    %v527 = vmax.f32 %v524, 0.0
    %v528 = vpack.c.bf16 %v527, %v527
    %v529 = vld [vmem:[%s3] sm:$0xf]
    %v530 = vld [vmem:[%s3 + $0x4] sm:$0xf]
    %v531 = vld [vmem:[%s3 + $0x8] sm:$0xf]
    %v532 = vld [vmem:[%s3 + $0xc] sm:$0xf]
    %v533 = vld [vmem:[%s4] sm:$0x1]
    %v535 = vperm.slane %v533, 0
    %v541 = vunpack.c.l.b16 %v529
    %v542 = vunpack.c.l.b16 %v530
    %v543 = vunpack.c.l.b16 %v531
    %v544 = vunpack.c.l.b16 %v532
    %v545 = vpack.c.b16 %v542, %v541
    %v546 = vpack.c.b16 %v544, %v543
    %vm549 = vcmask 261120
    %v551 = vsel %vm549, %v528, 0
    %553 = vmatpush.bf16.msra.mxu0 0
    %554 = vmatpush.bf16.msra.mxu0 0
    %555 = vmatpush.bf16.msra.mxu0 0
    %556 = vmatpush.bf16.msra.mxu0 0
    %557 = vmatpush.bf16.msra.mxu0 0
    %558 = vmatpush.bf16.msra.mxu0 0
    %559 = vmatpush.bf16.msra.mxu0 %v546
    %560 = vmatpush.bf16.msra.mxu0 %v545
    %561 = vmatmul.bf16.gmra.mxu0 %v551
    %v562 = vpop.f32.mrf.mxu0
    %v563 = vadd.f32 %v535, %v562
    %v564 = vpop.f32.mrf.mxu0
    %565 = vdwg.mxu0
    %v566 = vpack.c.bf16 %v563, %v563
    %567 = vst [vmem:[#allocation2] sm:$0xf] %v566
    // Predicated region
    $region22: #{tpu_custom_call.1} parent=1 // pred_check
      _
    $region23: #{tpu_custom_call.1} parent=1 // pred_check_branch
      %569 = sbr.rel (0) target = $region25
    $region24: #{tpu_custom_call.1} parent=1 // pred_region
      %571 = vsyncadd [#allocation3], 0
      %s573 = sshll.u32 [#allocation2], 4
      %s574 = int_to_ptr.vmem [resolvable:$true] %s573
      %s575 = sshll.u32 %s5, 4
      %s576 = int_to_ptr.hbm [resolvable:$true] %s575
      %578 = dma.vmem_to_hbm [thread:$0]  %s574, 64, %s576, [#allocation3]
    $region25: #{tpu_custom_call.1} parent=1 // pred_fallthru
      _
    // Predicated region
    $region26: #{tpu_custom_call.1} parent=1 // pred_check
      _
    $region27: #{tpu_custom_call.1} parent=1 // pred_check_branch
      %580 = sbr.rel (0) target = $region29
    $region28: #{tpu_custom_call.1} parent=1 // pred_region
      %582 = dma.done [#allocation3], 64
    $region29: #{tpu_custom_call.1} parent=1 // pred_fallthru
      _
    %583 = vsyncpa [#allocation3], 1

</llo_original>
